<compile_context>
chip_gen: v7x
topology: tpu7x:2x2x1
jax: 0.10.0
libtpu: 0.0.40
codegen_flags: <defaults>
</compile_context>

<pallas_src>
import functools
import logging
import math

import jax
import jax.numpy as jnp
from jax.experimental import pallas as pl
from jax.experimental.pallas import tpu as pltpu

_MIB = 1024 * 1024
_log = logging.getLogger(__name__)


# ---------------------------------------------------------------------------
# Kernels
# ---------------------------------------------------------------------------

def _rmsnorm_kernel(x_ref, w_ref, o_ref, *, eps, low_precision_scale):
    """Plain path: normalize over the whole lane axis (dim ideally % 128 == 0)."""
    x = x_ref[...]
    xf = x.astype(jnp.float32)
    ms = jnp.mean(xf * xf, axis=-1, keepdims=True)   # XLU lane reduce
    inv = jax.lax.rsqrt(ms + eps)                     # EUP (off the VPU slot)
    w = w_ref[...]                                    # dtype fixed by wrapper
    if low_precision_scale:
        # f32 accumulation, low-precision final multiply (v6e/v7x bf16 path).
        o_ref[...] = (x * inv.astype(x.dtype) * w).astype(o_ref.dtype)
    else:
        o_ref[...] = (xf * inv * w).astype(o_ref.dtype)


def _rmsnorm_folded_kernel(s_ref, st_ref, x_ref, w_ref, o_ref, *,
                           eps, inv_dim, low_precision_scale):
    """Lane-folded path for narrow dims.

    g original rows are folded into the lane axis (x_ref: (block_rows, g*dim)).
    s_ref: (g*dim, g) one-hot segment-indicator matrix, st_ref = s_ref.T.
    Segmented mean-of-squares and the inv broadcast back across lanes are done
    with two tiny MXU matmuls (layout friendly, no in-kernel reshapes; the MXU
    has plenty of slack in this HBM-bound kernel).
    """
    x = x_ref[...]
    xf = x.astype(jnp.float32)
    sq = xf * xf
    ss = jnp.dot(sq, s_ref[...], preferred_element_type=jnp.float32)       # (br, g)
    inv_seg = jax.lax.rsqrt(ss * inv_dim + eps)                             # (br, g)
    inv = jnp.dot(inv_seg, st_ref[...], preferred_element_type=jnp.float32)  # (br, g*dim)
    w = w_ref[...]
    if low_precision_scale:
        o_ref[...] = (x * inv.astype(x.dtype) * w).astype(o_ref.dtype)
    else:
        o_ref[...] = (xf * inv * w).astype(o_ref.dtype)


# ---------------------------------------------------------------------------
# Tiling helpers
# ---------------------------------------------------------------------------

def _round_up(n, m):
    return ((n + m - 1) // m) * m


def _device_kind():
    try:
        return jax.devices()[0].device_kind.lower()
    except Exception:
        return ""


def _vmem_capacity_bytes(is_v7x):
    try:
        return int(pltpu.get_tpu_info().vmem_capacity_bytes)
    except Exception:
        # Perf-only fallback (undersized tiles at worst); log so a broken
        # get_tpu_info path does not go unnoticed.
        _log.debug("pltpu.get_tpu_info() unavailable; using device_kind fallback")
        return (64 if is_v7x else 128) * _MIB


def _pick_block_rows(rows, lane, itemsize, f32_temp_rows, vmem_cap, is_v7x):
    """Choose block_rows by bytes: target 4-16 MiB input blocks, capped by a
    VMEM budget that already accounts for double-buffered in/out + f32 temps."""
    pack = 32 // itemsize          # sublane packing: 8 f32, 16 bf16, 32 int8/fp8
    if rows <= pack:
        return rows, pack

    frac = 0.5 if vmem_cap <= 64 * _MIB else 0.65
    budget = int(vmem_cap * frac)
    # bytes per block row: input + output (double-buffered each) + f32 temps
    per_row = lane * (2 * itemsize + 2 * itemsize + f32_temp_rows * 4)
    br_budget = max(pack, budget // max(per_row, 1))

    row_in_bytes = lane * itemsize
    br_hi = max(pack, (16 * _MIB) // row_in_bytes)   # ~16 MiB input-block ceiling
    br_lo = max(pack, (4 * _MIB) // row_in_bytes)    # ~4 MiB input-block target floor
    br = min(br_budget, br_hi)
    br = max(br, min(br_budget, br_lo))

    if is_v7x:
        # Keep >= ~4 grid steps so CORE_PARALLEL has >= 2 steps per TensorCore.
        br = min(br, max(pack, _round_up(-(-rows // 4), pack)))

    br = max(pack, (br // pack) * pack)
    br = min(br, _round_up(rows, pack))
    return br, pack


def _fold_factor(rows, dim):
    """Fold g rows into the lane axis so output stores are lane-dense."""
    if dim % 128 == 0:
        return 1
    g = 128 // math.gcd(dim, 128)
    if g <= 1 or rows % g != 0:
        # Fallback: masked narrow stores (correct, slower writeback path).
        return 1
    # Grow toward >= 512-lane blocks while the row count still divides evenly.
    while g * dim < 512 and rows % (2 * g) == 0:
        g *= 2
    return g


# ---------------------------------------------------------------------------
# Wrapper
# ---------------------------------------------------------------------------

def rmsnorm(x, weight, eps=1e-6, block_rows=None):
    """RMSNorm over the last axis of x, matching the PyTorch module.

    x:      any shape [..., dim]
    weight: shape (dim,)
    """
    orig_shape = x.shape
    dim = orig_shape[-1]
    rows = 1
    for s in orig_shape[:-1]:
        rows *= s

    kind = _device_kind()
    is_v7x = "v7" in kind
    is_v5e = ("v5e" in kind) or ("v5 lite" in kind) or ("v5litepod" in kind)
    vmem_cap = _vmem_capacity_bytes(is_v7x)

    dtype = x.dtype
    itemsize = jnp.dtype(dtype).itemsize
    # bf16/low-precision final scale (f32 accumulation kept) on v6e/v7x;
    # gated off on v5e (no bf16 VPU/EUP) and for 32-bit inputs.
    low_precision_scale = (itemsize < 4) and (not is_v5e)
    f32_temp_rows = 1 if low_precision_scale else 2

    g = _fold_factor(rows, dim)
    lane = g * dim
    rows_f = rows // g

    x2d = x.reshape(rows_f, lane)
    w_dtype = dtype if low_precision_scale else jnp.float32
    w1 = weight.astype(w_dtype)            # weight cast hoisted out of the kernel
    if g > 1:
        w1 = jnp.tile(w1, g)
    w2d = w1.reshape(1, lane)

    if block_rows is None:
        br, pack = _pick_block_rows(rows_f, lane, itemsize, f32_temp_rows,
                                    vmem_cap, is_v7x)
    else:
        pack = 32 // itemsize
        if rows_f <= pack:
            br = rows_f
        else:
            br = max(pack, (block_rows // pack) * pack)
            br = min(br, _round_up(rows_f, pack))

    # Rows are independent -> a padded partial last block is safe (see header).
    grid_steps = -(-rows_f // br)
    grid = (grid_steps,)

    in_block_bytes = br * lane * itemsize
    out_block_bytes = br * lane * itemsize
    temp_bytes = br * lane * 4 * f32_temp_rows
    const_bytes = lane * 4 + (lane * g * 4 * 2 if g > 1 else 0)
    total_bytes = 2 * in_block_bytes + 2 * out_block_bytes + temp_bytes + const_bytes
    # Honest scoped limit tracking the chosen tiling (+50% headroom); no 32 MiB floor.
    vmem_limit = min(int(vmem_cap * 0.9), max(int(total_bytes * 1.5), 8 * _MIB))

    # v7x: small blocks + deep grid -> deeper input pipelining hides per-step
    # DMA issue/wait.  Costs VMEM, so only when the blocks are small anyway.
    x_pipeline = None
    if is_v7x and in_block_bytes < 2 * _MIB and grid_steps >= 4:
        x_pipeline = pl.Buffered(3)

    out_shape = jax.ShapeDtypeStruct((rows_f, lane), dtype)

    def _build(dim_sems, pipeline_mode):
        x_kwargs = {}
        if pipeline_mode is not None:
            x_kwargs["pipeline_mode"] = pipeline_mode
        x_spec = pl.BlockSpec((br, lane), lambda i: (i, 0), **x_kwargs)
        w_spec = pl.BlockSpec((1, lane), lambda i: (0, 0))      # resident
        o_spec = pl.BlockSpec((br, lane), lambda i: (i, 0))
        if g > 1:
            kern = functools.partial(_rmsnorm_folded_kernel, eps=float(eps),
                                     inv_dim=1.0 / float(dim),
                                     low_precision_scale=low_precision_scale)
            s_spec = pl.BlockSpec((lane, g), lambda i: (0, 0))   # resident
            st_spec = pl.BlockSpec((g, lane), lambda i: (0, 0))  # resident
            in_specs = [s_spec, st_spec, x_spec, w_spec]
        else:
            kern = functools.partial(_rmsnorm_kernel, eps=float(eps),
                                     low_precision_scale=low_precision_scale)
            in_specs = [x_spec, w_spec]
        return pl.pallas_call(
            kern,
            out_shape=out_shape,
            grid_spec=pltpu.PrefetchScalarGridSpec(
                num_scalar_prefetch=0,
                grid=grid,
                in_specs=in_specs,
                out_specs=o_spec,
            ),
            compiler_params=pltpu.CompilerParams(
                dimension_semantics=dim_sems,
                vmem_limit_bytes=vmem_limit,
            ),
        )

    if g > 1:
        seg_ids = jnp.arange(lane, dtype=jnp.int32) // dim
        s_mat = (seg_ids[:, None]
                 == jnp.arange(g, dtype=jnp.int32)[None, :]).astype(jnp.float32)
        call_args = (s_mat, s_mat.T, x2d, w2d)
    else:
        call_args = (x2d, w2d)

    # v7x: prefer CORE_PARALLEL so the row grid splits across both TensorCores
    # ("parallel" alone is not guaranteed to); fall back if it fails to lower.
    if is_v7x:
        configs = [((pltpu.CORE_PARALLEL,), x_pipeline),
                   (("parallel",), x_pipeline),
                   (("parallel",), None)]
    else:
        configs = [(("parallel",), None)]
    seen, uniq = set(), []
    for c in configs:
        key = (tuple(str(s) for s in c[0]), c[1] is not None)
        if key not in seen:
            seen.add(key)
            uniq.append(c)

    last_err = None
    out2d = None
    for ds, pm in uniq:
        try:
            out2d = _build(ds, pm)(*call_args)
            break
        except Exception as e:          # config fallback (e.g. CORE_PARALLEL)
            last_err = e
            out2d = None
    if out2d is None:
        raise last_err

    return out2d.reshape(orig_shape)


# ---------------------------------------------------------------------------
# Self-test
# ---------------------------------------------------------------------------

if __name__ == "__main__":
    key = jax.random.PRNGKey(0)
    kx, kw = jax.random.split(key)
    batch, seq, hidden = 2, 8, 32

    x = jax.random.normal(kx, (batch, seq, hidden), dtype=jnp.float32)
    # The module initializes weight to ones; use a perturbed weight so the
    # gain path is actually exercised against the reference.
    weight = 1.0 + 0.1 * jax.random.normal(kw, (hidden,), dtype=jnp.float32)
    eps = 1e-6

    out = rmsnorm(x, weight, eps=eps)
    out = jax.block_until_ready(out)

    # pure-JAX reference (same math as the PyTorch forward)
    rms = jax.lax.rsqrt(jnp.mean(x * x, axis=-1, keepdims=True) + eps)
    ref = x * rms * weight
    assert out.shape == x.shape
    assert jnp.allclose(out, ref, atol=1e-5, rtol=1e-5)

    print("KERNEL_OK")
</pallas_src>

<mosaic_0001>
module attributes {stable_mosaic.version = 11 : i64} {
  func.func @_rmsnorm_folded_kernel(%arg0: i32, %arg1: memref<512x16xf32, #tpu.memory_space<vmem>>, %arg2: memref<16x512xf32, #tpu.memory_space<vmem>>, %arg3: memref<1x512xf32, #tpu.memory_space<vmem>>, %arg4: memref<1x512xf32, #tpu.memory_space<vmem>>, %arg5: memref<1x512xf32, #tpu.memory_space<vmem>>) attributes {dimension_semantics = [#tpu.dimension_semantics<parallel>], iteration_bounds = array<i64: 1>, scalar_prefetch = 0 : i64, scratch_operands = 0 : i64, tpu.core_type = #tpu.core_type<tc>, window_params = [{pipeline_mode = #tpu.pipeline_mode<synchronous>, transform_indices = @transform_0, window_bounds = array<i64: 512, 16>}, {pipeline_mode = #tpu.pipeline_mode<synchronous>, transform_indices = @transform_1, window_bounds = array<i64: 16, 512>}, {transform_indices = @transform_2, window_bounds = array<i64: 1, 512>}, {pipeline_mode = #tpu.pipeline_mode<synchronous>, transform_indices = @transform_3, window_bounds = array<i64: 1, 512>}, {transform_indices = @transform_4, window_bounds = array<i64: 1, 512>}]} {
    %c0 = arith.constant 0 : index
    %c0_0 = arith.constant 0 : index
    %0 = vector.load %arg3[%c0, %c0_0] : memref<1x512xf32, #tpu.memory_space<vmem>>, vector<1x512xf32>
    %1 = arith.mulf %0, %0 : vector<1x512xf32>
    %c0_1 = arith.constant 0 : index
    %c0_2 = arith.constant 0 : index
    %2 = vector.load %arg1[%c0_1, %c0_2] : memref<512x16xf32, #tpu.memory_space<vmem>>, vector<512x16xf32>
    %cst = arith.constant dense<0.000000e+00> : vector<1x16xf32>
    %3 = tpu.matmul %1, %2, %cst {dimension_numbers = #tpu.dot_dimension_numbers<[1], [0], [0], [1], [0, 0, 1, 1], [], []>} : vector<1x512xf32>, vector<512x16xf32>, vector<1x16xf32> -> vector<1x16xf32>
    %cst_3 = arith.constant 3.125000e-02 : f32
    %4 = vector.broadcast %cst_3 : f32 to vector<1x16xf32>
    %5 = arith.mulf %3, %4 : vector<1x16xf32>
    %cst_4 = arith.constant 9.99999997E-7 : f32
    %6 = vector.broadcast %cst_4 : f32 to vector<1x16xf32>
    %7 = arith.addf %5, %6 : vector<1x16xf32>
    %8 = math.rsqrt %7 : vector<1x16xf32>
    %c0_5 = arith.constant 0 : index
    %c0_6 = arith.constant 0 : index
    %9 = vector.load %arg2[%c0_5, %c0_6] : memref<16x512xf32, #tpu.memory_space<vmem>>, vector<16x512xf32>
    %cst_7 = arith.constant dense<0.000000e+00> : vector<1x512xf32>
    %10 = tpu.matmul %8, %9, %cst_7 {dimension_numbers = #tpu.dot_dimension_numbers<[1], [0], [0], [1], [0, 0, 1, 1], [], []>} : vector<1x16xf32>, vector<16x512xf32>, vector<1x512xf32> -> vector<1x512xf32>
    %c0_8 = arith.constant 0 : index
    %c0_9 = arith.constant 0 : index
    %11 = vector.load %arg4[%c0_8, %c0_9] : memref<1x512xf32, #tpu.memory_space<vmem>>, vector<1x512xf32>
    %12 = arith.mulf %0, %10 : vector<1x512xf32>
    %13 = arith.mulf %12, %11 : vector<1x512xf32>
    %c0_10 = arith.constant 0 : index
    %c0_11 = arith.constant 0 : index
    %14 = vector.load %arg5[%c0_10, %c0_11] : memref<1x512xf32, #tpu.memory_space<vmem>>, vector<1x512xf32>
    tpu.vector_store %arg5[%c0_10, %c0_11], %13 {strides = array<i32>} : memref<1x512xf32, #tpu.memory_space<vmem>>, vector<1x512xf32>,
    return
  }
  func.func @transform_0(%arg0: i32) -> (i32, i32) {
    %c0_i32 = arith.constant 0 : i32
    %c0_i32_0 = arith.constant 0 : i32
    %c0_i32_1 = arith.constant 0 : i32
    return %c0_i32, %c0_i32_0 : i32, i32
  }
  func.func @transform_1(%arg0: i32) -> (i32, i32) {
    %c0_i32 = arith.constant 0 : i32
    %c0_i32_0 = arith.constant 0 : i32
    %c0_i32_1 = arith.constant 0 : i32
    return %c0_i32, %c0_i32_0 : i32, i32
  }
  func.func @transform_2(%arg0: i32) -> (i32, i32) {
    %c0_i32 = arith.constant 0 : i32
    %c0_i32_0 = arith.constant 0 : i32
    return %arg0, %c0_i32 : i32, i32
  }
  func.func @transform_3(%arg0: i32) -> (i32, i32) {
    %c0_i32 = arith.constant 0 : i32
    %c0_i32_0 = arith.constant 0 : i32
    %c0_i32_1 = arith.constant 0 : i32
    return %c0_i32, %c0_i32_0 : i32, i32
  }
  func.func @transform_4(%arg0: i32) -> (i32, i32) {
    %c0_i32 = arith.constant 0 : i32
    %c0_i32_0 = arith.constant 0 : i32
    return %arg0, %c0_i32 : i32, i32
  }
}

</mosaic_0001>

<llo_original>
// kernel: tpu_custom_call.1
$region0: #{tpu_custom_call.1}
  #allocation0 [shape = 'u32[]', space=smem, size = 0x4, offset = 0x4, fixed_abs, tag = 'smem constant byte address 0x4 - core index']
  #allocation1 [shape = 'u32[144,128]{1,0:T(1,128)}', space=vmem, size = 0x12000, scoped, tag = 'internal scratch']
  %s0 = inlined_call_operand.vmem [shape: f32[512,16], index: 0, kind: input, shape index: {}]
  %s1 = inlined_call_operand.vmem [shape: f32[16,512], index: 1, kind: input, shape index: {}]
  %s2 = inlined_call_operand.vmem [shape: f32[1,512], index: 2, kind: input, shape index: {}]
  %s3 = inlined_call_operand.vmem [shape: f32[1,512], index: 3, kind: input, shape index: {}]
  %s4 = inlined_call_operand.hbm [shape: f32[1,512], index: 4, kind: output, shape index: {}]
  %s5 = sld [smem:[#allocation0]]
  $region26: #{tpu_custom_call.1} parent=0
    _
  %s7 = ssub.s32 1, %s5
  %s8 = scalar_select 0, %s7, %s5
  $region1: #{tpu_custom_call.1} parent=0
    #allocation2 [shape = 'u8[2048]{0}', space=vmem, size = 0x800, scoped, tag = 'output window, operand 0, single buffered']
    #allocation3 [shape = 's32[1]{0}', space=sflag, size = 0x4, scoped, tag = 'scoped memory for tpu_custom_call.1']
    %9 = vsyncpa [#allocation3], 0
    // Predicated region
    $region2: #{tpu_custom_call.1} parent=1 // pred_check
      _
    $region3: #{tpu_custom_call.1} parent=1 // pred_check_branch
      %11 = sbr.rel (0) target = $region5
    $region4: #{tpu_custom_call.1} parent=1 // pred_region
      _
    $region5: #{tpu_custom_call.1} parent=1 // pred_fallthru
      _
    // Predicated region
    $region6: #{tpu_custom_call.1} parent=1 // pred_check
      _
    $region7: #{tpu_custom_call.1} parent=1 // pred_check_branch
      %13 = sbr.rel (0) target = $region9
    $region8: #{tpu_custom_call.1} parent=1 // pred_region
      _
    $region9: #{tpu_custom_call.1} parent=1 // pred_fallthru
      _
    // Predicated region
    $region10: #{tpu_custom_call.1} parent=1 // pred_check
      _
    $region11: #{tpu_custom_call.1} parent=1 // pred_check_branch
      %15 = sbr.rel (0) target = $region13
    $region12: #{tpu_custom_call.1} parent=1 // pred_region
      _
    $region13: #{tpu_custom_call.1} parent=1 // pred_fallthru
      _
    // Predicated region
    $region14: #{tpu_custom_call.1} parent=1 // pred_check
      _
    $region15: #{tpu_custom_call.1} parent=1 // pred_check_branch
      %17 = sbr.rel (0) target = $region17
    $region16: #{tpu_custom_call.1} parent=1 // pred_region
      _
    $region17: #{tpu_custom_call.1} parent=1 // pred_fallthru
      _
    %v18 = vld [vmem:[%s2] sm:$0xf]
    %v19 = vmul.f32 %v18, %v18
    %v20 = vld [vmem:[%s0] sm:$0xff]
    %v21 = vld [vmem:[%s0 + $0x8] sm:$0xff]
    %v22 = vld [vmem:[%s0 + $0x10] sm:$0xff]
    %v23 = vld [vmem:[%s0 + $0x18] sm:$0xff]
    %v24 = vld [vmem:[%s0 + $0x20] sm:$0xff]
    %v25 = vld [vmem:[%s0 + $0x28] sm:$0xff]
    %v26 = vld [vmem:[%s0 + $0x30] sm:$0xff]
    %v27 = vld [vmem:[%s0 + $0x38] sm:$0xff]
    %v28 = vld [vmem:[%s0 + $0x40] sm:$0xff]
    %v29 = vld [vmem:[%s0 + $0x48] sm:$0xff]
    %v30 = vld [vmem:[%s0 + $0x50] sm:$0xff]
    %v31 = vld [vmem:[%s0 + $0x58] sm:$0xff]
    %v32 = vld [vmem:[%s0 + $0x60] sm:$0xff]
    %v33 = vld [vmem:[%s0 + $0x68] sm:$0xff]
    %v34 = vld [vmem:[%s0 + $0x70] sm:$0xff]
    %v35 = vld [vmem:[%s0 + $0x78] sm:$0xff]
    %v36 = vld [vmem:[%s0 + $0x80] sm:$0xff]
    %v37 = vld [vmem:[%s0 + $0x88] sm:$0xff]
    %v38 = vld [vmem:[%s0 + $0x90] sm:$0xff]
    %v39 = vld [vmem:[%s0 + $0x98] sm:$0xff]
    %v40 = vld [vmem:[%s0 + $0xa0] sm:$0xff]
    %v41 = vld [vmem:[%s0 + $0xa8] sm:$0xff]
    %v42 = vld [vmem:[%s0 + $0xb0] sm:$0xff]
    %v43 = vld [vmem:[%s0 + $0xb8] sm:$0xff]
    %v44 = vld [vmem:[%s0 + $0xc0] sm:$0xff]
    %v45 = vld [vmem:[%s0 + $0xc8] sm:$0xff]
    %v46 = vld [vmem:[%s0 + $0xd0] sm:$0xff]
    %v47 = vld [vmem:[%s0 + $0xd8] sm:$0xff]
    %v48 = vld [vmem:[%s0 + $0xe0] sm:$0xff]
    %v49 = vld [vmem:[%s0 + $0xe8] sm:$0xff]
    %v50 = vld [vmem:[%s0 + $0xf0] sm:$0xff]
    %v51 = vld [vmem:[%s0 + $0xf8] sm:$0xff]
    %v52 = vld [vmem:[%s0 + $0x100] sm:$0xff]
    %v53 = vld [vmem:[%s0 + $0x108] sm:$0xff]
    %v54 = vld [vmem:[%s0 + $0x110] sm:$0xff]
    %v55 = vld [vmem:[%s0 + $0x118] sm:$0xff]
    %v56 = vld [vmem:[%s0 + $0x120] sm:$0xff]
    %v57 = vld [vmem:[%s0 + $0x128] sm:$0xff]
    %v58 = vld [vmem:[%s0 + $0x130] sm:$0xff]
    %v59 = vld [vmem:[%s0 + $0x138] sm:$0xff]
    %v60 = vld [vmem:[%s0 + $0x140] sm:$0xff]
    %v61 = vld [vmem:[%s0 + $0x148] sm:$0xff]
    %v62 = vld [vmem:[%s0 + $0x150] sm:$0xff]
    %v63 = vld [vmem:[%s0 + $0x158] sm:$0xff]
    %v64 = vld [vmem:[%s0 + $0x160] sm:$0xff]
    %v65 = vld [vmem:[%s0 + $0x168] sm:$0xff]
    %v66 = vld [vmem:[%s0 + $0x170] sm:$0xff]
    %v67 = vld [vmem:[%s0 + $0x178] sm:$0xff]
    %v68 = vld [vmem:[%s0 + $0x180] sm:$0xff]
    %v69 = vld [vmem:[%s0 + $0x188] sm:$0xff]
    %v70 = vld [vmem:[%s0 + $0x190] sm:$0xff]
    %v71 = vld [vmem:[%s0 + $0x198] sm:$0xff]
    %v72 = vld [vmem:[%s0 + $0x1a0] sm:$0xff]
    %v73 = vld [vmem:[%s0 + $0x1a8] sm:$0xff]
    %v74 = vld [vmem:[%s0 + $0x1b0] sm:$0xff]
    %v75 = vld [vmem:[%s0 + $0x1b8] sm:$0xff]
    %v76 = vld [vmem:[%s0 + $0x1c0] sm:$0xff]
    %v77 = vld [vmem:[%s0 + $0x1c8] sm:$0xff]
    %v78 = vld [vmem:[%s0 + $0x1d0] sm:$0xff]
    %v79 = vld [vmem:[%s0 + $0x1d8] sm:$0xff]
    %v80 = vld [vmem:[%s0 + $0x1e0] sm:$0xff]
    %v81 = vld [vmem:[%s0 + $0x1e8] sm:$0xff]
    %v82 = vld [vmem:[%s0 + $0x1f0] sm:$0xff]
    %v83 = vld [vmem:[%s0 + $0x1f8] sm:$0xff]
    %v85 = vlaneseq
    %v86 = vshrl.u32 %v85, 7
    %v87 = vsub.s32 0, %v86
    %v88 = vrot.slane %v19, %v87
    %v89 = vlaneseq
    %v90 = vshrl.u32 %v89, 7
    %v91 = vsub.s32 1, %v90
    %v92 = vrot.slane %v19, %v91
    %v93 = vlaneseq
    %v94 = vshrl.u32 %v93, 7
    %v95 = vsub.s32 2, %v94
    %v96 = vrot.slane %v19, %v95
    %v97 = vlaneseq
    %v98 = vshrl.u32 %v97, 7
    %v99 = vsub.s32 3, %v98
    %v100 = vrot.slane %v19, %v99
    %105 = vmatprep.subr.mxu0 0.0
    %106 = vmatpush1.msra.mxu0 %v20
    %107 = vmatprep.subr.mxu0 0.0
    %108 = vmatpush1.msra.mxu0 %v21
    %109 = vmatprep.subr.mxu0 0.0
    %110 = vmatpush1.msra.mxu0 %v22
    %111 = vmatprep.subr.mxu0 0.0
    %112 = vmatpush1.msra.mxu0 %v23
    %113 = vmatprep.subr.mxu0 0.0
    %114 = vmatpush1.msra.mxu0 %v24
    %115 = vmatprep.subr.mxu0 0.0
    %116 = vmatpush1.msra.mxu0 %v25
    %117 = vmatprep.subr.mxu0 0.0
    %118 = vmatpush1.msra.mxu0 %v26
    %119 = vmatprep.subr.mxu0 0.0
    %120 = vmatpush1.msra.mxu0 %v27
    %121 = vmatprep.subr.mxu0 0.0
    %122 = vmatpush1.msra.mxu0 %v28
    %123 = vmatprep.subr.mxu0 0.0
    %124 = vmatpush1.msra.mxu0 %v29
    %125 = vmatprep.subr.mxu0 0.0
    %126 = vmatpush1.msra.mxu0 %v30
    %127 = vmatprep.subr.mxu0 0.0
    %128 = vmatpush1.msra.mxu0 %v31
    %129 = vmatprep.subr.mxu0 0.0
    %130 = vmatpush1.msra.mxu0 %v32
    %131 = vmatprep.subr.mxu0 0.0
    %132 = vmatpush1.msra.mxu0 %v33
    %133 = vmatprep.subr.mxu0 0.0
    %134 = vmatpush1.msra.mxu0 %v34
    %135 = vmatprep.subr.mxu0 0.0
    %136 = vmatpush1.msra.mxu0 %v35
    %137 = vmatprep.subr.mxu0 0.0
    %138 = vmatpush1.msra.mxu0 %v36
    %139 = vmatprep.subr.mxu0 0.0
    %140 = vmatpush1.msra.mxu0 %v37
    %141 = vmatprep.subr.mxu0 0.0
    %142 = vmatpush1.msra.mxu0 %v38
    %143 = vmatprep.subr.mxu0 0.0
    %144 = vmatpush1.msra.mxu0 %v39
    %145 = vmatprep.subr.mxu0 0.0
    %146 = vmatpush1.msra.mxu0 %v40
    %147 = vmatprep.subr.mxu0 0.0
    %148 = vmatpush1.msra.mxu0 %v41
    %149 = vmatprep.subr.mxu0 0.0
    %150 = vmatpush1.msra.mxu0 %v42
    %151 = vmatprep.subr.mxu0 0.0
    %152 = vmatpush1.msra.mxu0 %v43
    %153 = vmatprep.subr.mxu0 0.0
    %154 = vmatpush1.msra.mxu0 %v44
    %155 = vmatprep.subr.mxu0 0.0
    %156 = vmatpush1.msra.mxu0 %v45
    %157 = vmatprep.subr.mxu0 0.0
    %158 = vmatpush1.msra.mxu0 %v46
    %159 = vmatprep.subr.mxu0 0.0
    %160 = vmatpush1.msra.mxu0 %v47
    %161 = vmatprep.subr.mxu0 0.0
    %162 = vmatpush1.msra.mxu0 %v48
    %163 = vmatprep.subr.mxu0 0.0
    %164 = vmatpush1.msra.mxu0 %v49
    %165 = vmatprep.subr.mxu0 0.0
    %166 = vmatpush1.msra.mxu0 %v50
    %167 = vmatprep.subr.mxu0 0.0
    %168 = vmatpush1.msra.mxu0 %v51
    %169 = vmatprep.mubr.f32.mxu0 %v92
    %170 = vmatmul.mubr.f32.gmra.mrb[0].mxu0 %v88
    %v171 = vpop.f32.mrb[0].mxu0
    %v172 = vadd.f32 0.0, %v171
    %v173 = vpop.f32.mrb[0].mxu0
    %174 = vdwg.mxu0
    %175 = vmatprep.subr.mxu0 0.0
    %176 = vmatpush1.msra.mxu0 %v52
    %177 = vmatprep.subr.mxu0 0.0
    %178 = vmatpush1.msra.mxu0 %v53
    %179 = vmatprep.subr.mxu0 0.0
    %180 = vmatpush1.msra.mxu0 %v54
    %181 = vmatprep.subr.mxu0 0.0
    %182 = vmatpush1.msra.mxu0 %v55
    %183 = vmatprep.subr.mxu0 0.0
    %184 = vmatpush1.msra.mxu0 %v56
    %185 = vmatprep.subr.mxu0 0.0
    %186 = vmatpush1.msra.mxu0 %v57
    %187 = vmatprep.subr.mxu0 0.0
    %188 = vmatpush1.msra.mxu0 %v58
    %189 = vmatprep.subr.mxu0 0.0
    %190 = vmatpush1.msra.mxu0 %v59
    %191 = vmatprep.subr.mxu0 0.0
    %192 = vmatpush1.msra.mxu0 %v60
    %193 = vmatprep.subr.mxu0 0.0
    %194 = vmatpush1.msra.mxu0 %v61
    %195 = vmatprep.subr.mxu0 0.0
    %196 = vmatpush1.msra.mxu0 %v62
    %197 = vmatprep.subr.mxu0 0.0
    %198 = vmatpush1.msra.mxu0 %v63
    %199 = vmatprep.subr.mxu0 0.0
    %200 = vmatpush1.msra.mxu0 %v64
    %201 = vmatprep.subr.mxu0 0.0
    %202 = vmatpush1.msra.mxu0 %v65
    %203 = vmatprep.subr.mxu0 0.0
    %204 = vmatpush1.msra.mxu0 %v66
    %205 = vmatprep.subr.mxu0 0.0
    %206 = vmatpush1.msra.mxu0 %v67
    %207 = vmatprep.subr.mxu0 0.0
    %208 = vmatpush1.msra.mxu0 %v68
    %209 = vmatprep.subr.mxu0 0.0
    %210 = vmatpush1.msra.mxu0 %v69
    %211 = vmatprep.subr.mxu0 0.0
    %212 = vmatpush1.msra.mxu0 %v70
    %213 = vmatprep.subr.mxu0 0.0
    %214 = vmatpush1.msra.mxu0 %v71
    %215 = vmatprep.subr.mxu0 0.0
    %216 = vmatpush1.msra.mxu0 %v72
    %217 = vmatprep.subr.mxu0 0.0
    %218 = vmatpush1.msra.mxu0 %v73
    %219 = vmatprep.subr.mxu0 0.0
    %220 = vmatpush1.msra.mxu0 %v74
    %221 = vmatprep.subr.mxu0 0.0
    %222 = vmatpush1.msra.mxu0 %v75
    %223 = vmatprep.subr.mxu0 0.0
    %224 = vmatpush1.msra.mxu0 %v76
    %225 = vmatprep.subr.mxu0 0.0
    %226 = vmatpush1.msra.mxu0 %v77
    %227 = vmatprep.subr.mxu0 0.0
    %228 = vmatpush1.msra.mxu0 %v78
    %229 = vmatprep.subr.mxu0 0.0
    %230 = vmatpush1.msra.mxu0 %v79
    %231 = vmatprep.subr.mxu0 0.0
    %232 = vmatpush1.msra.mxu0 %v80
    %233 = vmatprep.subr.mxu0 0.0
    %234 = vmatpush1.msra.mxu0 %v81
    %235 = vmatprep.subr.mxu0 0.0
    %236 = vmatpush1.msra.mxu0 %v82
    %237 = vmatprep.subr.mxu0 0.0
    %238 = vmatpush1.msra.mxu0 %v83
    %239 = vmatprep.mubr.f32.mxu0 %v100
    %240 = vmatmul.mubr.f32.gmra.mrb[0].mxu0 %v96
    %v241 = vpop.f32.mrb[0].mxu0
    %v242 = vadd.f32 %v172, %v241
    %v243 = vpop.f32.mrb[0].mxu0
    %244 = vdwg.mxu0
    %v245 = vmul.f32 %v242, 0.03125
    %v246 = vadd.f32 %v245, 1e-06
    %v247 = vrsqrt.pop %v246
    %v248 = vld [vmem:[%s1] sm:$0xff]
    %v249 = vld [vmem:[%s1 + $0x8] sm:$0xff]
    %v250 = vld [vmem:[%s1 + $0x10] sm:$0xff]
    %v251 = vld [vmem:[%s1 + $0x18] sm:$0xff]
    %v252 = vld [vmem:[%s1 + $0x20] sm:$0xff]
    %v253 = vld [vmem:[%s1 + $0x28] sm:$0xff]
    %v254 = vld [vmem:[%s1 + $0x30] sm:$0xff]
    %v255 = vld [vmem:[%s1 + $0x38] sm:$0xff]
    %vm256 = vcmask 130048
    %v258 = vsel %vm256, %v247, 0
    %260 = vmatprep.subr.mxu0 %v249
    %261 = vmatpush1.msra.mxu0 %v248
    %262 = vmatprep.subr.mxu0 %v253
    %263 = vmatpush1.msra.mxu0 %v252
    %264 = vmatprep.subr.mxu0 0.0
    %265 = vmatpush1.msra.mxu0 0.0
    %266 = vmatprep.subr.mxu0 0.0
    %267 = vmatpush1.msra.mxu0 0.0
    %268 = vmatprep.subr.mxu0 0.0
    %269 = vmatpush1.msra.mxu0 0.0
    %270 = vmatprep.subr.mxu0 0.0
    %271 = vmatpush1.msra.mxu0 0.0
    %272 = vmatprep.subr.mxu0 0.0
    %273 = vmatpush1.msra.mxu0 0.0
    %274 = vmatprep.subr.mxu0 0.0
    %275 = vmatpush1.msra.mxu0 0.0
    %276 = vmatprep.subr.mxu0 0.0
    %277 = vmatpush1.msra.mxu0 0.0
    %278 = vmatprep.subr.mxu0 0.0
    %279 = vmatpush1.msra.mxu0 0.0
    %280 = vmatprep.subr.mxu0 0.0
    %281 = vmatpush1.msra.mxu0 0.0
    %282 = vmatprep.subr.mxu0 0.0
    %283 = vmatpush1.msra.mxu0 0.0
    %284 = vmatprep.subr.mxu0 0.0
    %285 = vmatpush1.msra.mxu0 0.0
    %286 = vmatprep.subr.mxu0 0.0
    %287 = vmatpush1.msra.mxu0 0.0
    %288 = vmatprep.subr.mxu0 0.0
    %289 = vmatpush1.msra.mxu0 0.0
    %290 = vmatprep.subr.mxu0 0.0
    %291 = vmatpush1.msra.mxu0 0.0
    %292 = vmatprep.subr.mxu0 0.0
    %293 = vmatpush1.msra.mxu0 0.0
    %294 = vmatprep.subr.mxu0 0.0
    %295 = vmatpush1.msra.mxu0 0.0
    %296 = vmatprep.subr.mxu0 0.0
    %297 = vmatpush1.msra.mxu0 0.0
    %298 = vmatprep.subr.mxu0 0.0
    %299 = vmatpush1.msra.mxu0 0.0
    %300 = vmatprep.subr.mxu0 0.0
    %301 = vmatpush1.msra.mxu0 0.0
    %302 = vmatprep.subr.mxu0 0.0
    %303 = vmatpush1.msra.mxu0 0.0
    %304 = vmatprep.subr.mxu0 0.0
    %305 = vmatpush1.msra.mxu0 0.0
    %306 = vmatprep.subr.mxu0 0.0
    %307 = vmatpush1.msra.mxu0 0.0
    %308 = vmatprep.subr.mxu0 0.0
    %309 = vmatpush1.msra.mxu0 0.0
    %310 = vmatprep.subr.mxu0 0.0
    %311 = vmatpush1.msra.mxu0 0.0
    %312 = vmatprep.subr.mxu0 0.0
    %313 = vmatpush1.msra.mxu0 0.0
    %314 = vmatprep.subr.mxu0 0.0
    %315 = vmatpush1.msra.mxu0 0.0
    %316 = vmatprep.subr.mxu0 0.0
    %317 = vmatpush1.msra.mxu0 0.0
    %318 = vmatprep.subr.mxu0 0.0
    %319 = vmatpush1.msra.mxu0 0.0
    %320 = vmatprep.subr.mxu0 0.0
    %321 = vmatpush1.msra.mxu0 0.0
    %322 = vmatprep.subr.mxu0 0.0
    %323 = vmatpush1.msra.mxu0 0.0
    %324 = vmatprep.mubr.f32.mxu0 0.0
    %325 = vmatmul.mubr.f32.gmra.mrb[0].mxu0 %v258
    %v326 = vpop.f32.mrb[0].mxu0
    %v327 = vadd.f32 0.0, %v326
    %v328 = vpop.f32.mrb[0].mxu0
    %v329 = vadd.f32 0.0, %v328
    %330 = vdwg.mxu0
    %331 = vmatprep.subr.mxu0 %v251
    %332 = vmatpush1.msra.mxu0 %v250
    %333 = vmatprep.subr.mxu0 %v255
    %334 = vmatpush1.msra.mxu0 %v254
    %335 = vmatprep.subr.mxu0 0.0
    %336 = vmatpush1.msra.mxu0 0.0
    %337 = vmatprep.subr.mxu0 0.0
    %338 = vmatpush1.msra.mxu0 0.0
    %339 = vmatprep.subr.mxu0 0.0
    %340 = vmatpush1.msra.mxu0 0.0
    %341 = vmatprep.subr.mxu0 0.0
    %342 = vmatpush1.msra.mxu0 0.0
    %343 = vmatprep.subr.mxu0 0.0
    %344 = vmatpush1.msra.mxu0 0.0
    %345 = vmatprep.subr.mxu0 0.0
    %346 = vmatpush1.msra.mxu0 0.0
    %347 = vmatprep.subr.mxu0 0.0
    %348 = vmatpush1.msra.mxu0 0.0
    %349 = vmatprep.subr.mxu0 0.0
    %350 = vmatpush1.msra.mxu0 0.0
    %351 = vmatprep.subr.mxu0 0.0
    %352 = vmatpush1.msra.mxu0 0.0
    %353 = vmatprep.subr.mxu0 0.0
    %354 = vmatpush1.msra.mxu0 0.0
    %355 = vmatprep.subr.mxu0 0.0
    %356 = vmatpush1.msra.mxu0 0.0
    %357 = vmatprep.subr.mxu0 0.0
    %358 = vmatpush1.msra.mxu0 0.0
    %359 = vmatprep.subr.mxu0 0.0
    %360 = vmatpush1.msra.mxu0 0.0
    %361 = vmatprep.subr.mxu0 0.0
    %362 = vmatpush1.msra.mxu0 0.0
    %363 = vmatprep.subr.mxu0 0.0
    %364 = vmatpush1.msra.mxu0 0.0
    %365 = vmatprep.subr.mxu0 0.0
    %366 = vmatpush1.msra.mxu0 0.0
    %367 = vmatprep.subr.mxu0 0.0
    %368 = vmatpush1.msra.mxu0 0.0
    %369 = vmatprep.subr.mxu0 0.0
    %370 = vmatpush1.msra.mxu0 0.0
    %371 = vmatprep.subr.mxu0 0.0
    %372 = vmatpush1.msra.mxu0 0.0
    %373 = vmatprep.subr.mxu0 0.0
    %374 = vmatpush1.msra.mxu0 0.0
    %375 = vmatprep.subr.mxu0 0.0
    %376 = vmatpush1.msra.mxu0 0.0
    %377 = vmatprep.subr.mxu0 0.0
    %378 = vmatpush1.msra.mxu0 0.0
    %379 = vmatprep.subr.mxu0 0.0
    %380 = vmatpush1.msra.mxu0 0.0
    %381 = vmatprep.subr.mxu0 0.0
    %382 = vmatpush1.msra.mxu0 0.0
    %383 = vmatprep.subr.mxu0 0.0
    %384 = vmatpush1.msra.mxu0 0.0
    %385 = vmatprep.subr.mxu0 0.0
    %386 = vmatpush1.msra.mxu0 0.0
    %387 = vmatprep.subr.mxu0 0.0
    %388 = vmatpush1.msra.mxu0 0.0
    %389 = vmatprep.subr.mxu0 0.0
    %390 = vmatpush1.msra.mxu0 0.0
    %391 = vmatprep.subr.mxu0 0.0
    %392 = vmatpush1.msra.mxu0 0.0
    %393 = vmatprep.subr.mxu0 0.0
    %394 = vmatpush1.msra.mxu0 0.0
    %395 = vmatprep.mubr.f32.mxu0 0.0
    %396 = vmatmul.mubr.f32.gmra.mrb[0].mxu0 %v258
    %v397 = vpop.f32.mrb[0].mxu0
    %v398 = vadd.f32 0.0, %v397
    %v399 = vpop.f32.mrb[0].mxu0
    %v400 = vadd.f32 0.0, %v399
    %401 = vdwg.mxu0
    %v402 = vld [vmem:[%s3] sm:$0xf]
    %v407 = vcombine.low %v327, %v329
    %v408 = vcombine.low %v398, %v400
    %v410 = vunpack.c.l.s4 1966171168
    %v411 = vunpack.c.0.s8 %v410
    %v412 = vlaneseq
    %v413 = vshrl.u32 %v412, 7
    %v414 = vsub.s32 %v411, %v413
    %v415 = vrot.slane %v407, %v414
    %v417 = vunpack.c.l.s4 1966171168
    %v418 = vunpack.c.0.s8 %v417
    %v419 = vlaneseq
    %v420 = vshrl.u32 %v419, 7
    %v421 = vsub.s32 %v418, %v420
    %v422 = vrot.slane %v408, %v421
    %v423 = vcombine.low %v415, %v422
    %v425 = vunpack.c.l.s4 1966171168
    %v426 = vunpack.c.0.s8 %v425
    %v427 = vlaneseq
    %v428 = vshrl.u32 %v427, 7
    %v429 = vsub.s32 %v426, %v428
    %v430 = vrot.slane %v423, %v429
    %v432 = vmul.f32 %v18, %v430
    %v433 = vmul.f32 %v432, %v402
    %v434 = vlaneseq
    %vm435 = vcmp.ge.s32.totalorder %v434, 0
    %vm436 = vcmp.lt.s32.totalorder %v434, 512
    %vm437 = vmand %vm435, %vm436
    %438 = vst.msk [vmem:[#allocation2] sm:$0xf] %vm437, %v433
    // Predicated region
    $region18: #{tpu_custom_call.1} parent=1 // pred_check
      _
    $region19: #{tpu_custom_call.1} parent=1 // pred_check_branch
      %440 = sbr.rel (0) target = $region21
    $region20: #{tpu_custom_call.1} parent=1 // pred_region
      %s442 = ssub.s32 64, 64
      %443 = vsyncadd [#allocation3], %s442
      %s445 = sshll.u32 [#allocation2], 4
      %s446 = int_to_ptr.vmem [resolvable:$true] %s445
      %448 = dma.vmem_to_hbm [thread:$0]  %s446, 64, %s4, [#allocation3]
    $region21: #{tpu_custom_call.1} parent=1 // pred_fallthru
      _
    // Predicated region
    $region22: #{tpu_custom_call.1} parent=1 // pred_check
      _
    $region23: #{tpu_custom_call.1} parent=1 // pred_check_branch
      %450 = sbr.rel (0) target = $region25
    $region24: #{tpu_custom_call.1} parent=1 // pred_region
      %451 = dma.done [#allocation3], 64
    $region25: #{tpu_custom_call.1} parent=1 // pred_fallthru
      _
    %452 = vsyncpa [#allocation3], 1

</llo_original>
